<compile_context>
chip_gen: v5e
topology: v5e:2x2
jax: 0.10.0
libtpu: 0.0.40
codegen_flags: <defaults>
</compile_context>

<pallas_src>
import jax
import jax.numpy as jnp
from jax.experimental import pallas as pl
from jax.experimental.pallas import tpu as pltpu


def _round_up(v, m):
    return ((v + m - 1) // m) * m


def _predictor_kernel(x_ref, w_ref, b_ref, out_ref):
    # x tile arrives in its original dtype; cast to bf16 right before the MXU
    # (in-kernel VPU cast, hidden under the matmul).  Accumulate + bias in f32,
    # store directly in the output dtype.
    x_bf = x_ref[...].astype(jnp.bfloat16)
    acc = jnp.dot(x_bf, w_ref[...], preferred_element_type=jnp.float32)
    out_ref[...] = (acc + b_ref[...]).astype(out_ref.dtype)


def prepare_fast_rcnn_weights(w_cls, b_cls, w_bbox, b_bbox):
    """One-time (model-load) weight preprocessing.

    Pads cls and bbox output columns to 128-lane multiples *independently* so
    the cls/bbox boundary is lane-aligned, then fuses them into one bf16 slab
    (in_channels, cls_pad + bbox_pad) plus one f32 bias row.
    """
    num_classes = int(w_cls.shape[1])
    num_bbox = int(w_bbox.shape[1])
    cls_pad = _round_up(num_classes, 128)
    bbox_pad = _round_up(num_bbox, 128)

    w_c = jnp.pad(w_cls, ((0, 0), (0, cls_pad - num_classes)))
    w_b = jnp.pad(w_bbox, ((0, 0), (0, bbox_pad - num_bbox)))
    w_fused = jnp.concatenate([w_c, w_b], axis=1).astype(jnp.bfloat16)

    b_c = jnp.pad(b_cls, (0, cls_pad - num_classes))
    b_b = jnp.pad(b_bbox, (0, bbox_pad - num_bbox))
    b_fused = (jnp.concatenate([b_c, b_b], axis=0)
               .reshape(1, cls_pad + bbox_pad).astype(jnp.float32))
    return w_fused, b_fused, num_classes, num_bbox, cls_pad


def fast_rcnn_predictor_fused(x, w_fused, b_fused, num_classes, num_bbox,
                              cls_pad, *, tile_n=512):
    """Forward pass with pre-fused weights.

    x        : (N, in_channels) or (N, C, H, W) with C*H*W == in_channels
    w_fused  : (in_channels, out_pad) bf16 fused weight slab
    b_fused  : (1, out_pad) f32 fused bias row
    returns (scores: (N, num_classes), bbox_deltas: (N, num_classes * 4))
    """
    if x.ndim == 4:
        x = x.reshape(x.shape[0], -1)          # flatten(start_dim=1)
    n, d = x.shape
    out_pad = int(w_fused.shape[1])
    out_dtype = x.dtype

    # --- ROI-row tile: multiple of 8 sublanes; no wrapper-side N padding. ----
    tn = min(_round_up(tile_n, 8), _round_up(n, 8))

    def _vmem_bytes(t):
        # 2x double-buffered x tile + 2x out tile + weight slab + bias.
        return (2 * t * d * x.dtype.itemsize
                + 2 * t * out_pad * out_dtype.itemsize
                + d * out_pad * 2 + out_pad * 4)

    while tn > 64 and _vmem_bytes(tn) > 30 * 1024 * 1024:
        tn = _round_up(tn // 2, 8)

    n_tiles = pl.cdiv(n, tn)

    # --- Fused-output-column split (keeps v7x's 2nd TensorCore busy when the
    # ROI grid has only one step).  Single column tile otherwise, so weights
    # stay grid-resident. ------------------------------------------------------
    col_lanes = out_pad // 128
    if n_tiles == 1 and col_lanes >= 2:
        to = 128 * ((col_lanes + 1) // 2)
    else:
        to = out_pad
    c_tiles = pl.cdiv(out_pad, to)

    # Grid-resident weights/bias are fetched exactly once -> single-buffer them
    # to halve their VMEM footprint (relevant under v7x's 64 MiB VMEM).
    w_mode = pl.Buffered(1) if c_tiles == 1 else None

    cost = pl.CostEstimate(
        flops=2 * n * d * out_pad,
        transcendentals=0,
        bytes_accessed=(n * d * x.dtype.itemsize
                        + d * out_pad * 2
                        + out_pad * 4
                        + n * out_pad * out_dtype.itemsize),
    )

    out_padded = pl.pallas_call(
        _predictor_kernel,
        out_shape=jax.ShapeDtypeStruct((n, out_pad), out_dtype),
        grid=(n_tiles, c_tiles),
        in_specs=[
            # x: one f32 ROI tile per row-grid step (double-buffered); constant
            # block index along the column axis -> not re-fetched per column.
            pl.BlockSpec((tn, d), lambda i, j: (i, 0)),
            # fused weights + bias.
            pl.BlockSpec((d, to), lambda i, j: (0, j), pipeline_mode=w_mode),
            pl.BlockSpec((1, to), lambda i, j: (0, j), pipeline_mode=w_mode),
        ],
        out_specs=pl.BlockSpec((tn, to), lambda i, j: (i, j)),
        compiler_params=pltpu.CompilerParams(
            dimension_semantics=("parallel", "parallel")),
        cost_estimate=cost,
    )(x, w_fused, b_fused)

    # Lane-aligned split: scores start at column 0, bbox at column cls_pad
    # (a 128 multiple), so both slices are cheap aligned views.
    scores = out_padded[:, :num_classes]
    bbox_deltas = out_padded[:, cls_pad:cls_pad + num_bbox]
    return scores, bbox_deltas


def fast_rcnn_predictor(x, w_cls, b_cls, w_bbox, b_bbox, *, tile_n=512):
    """Convenience wrapper: preps weights then runs the fused forward.

    For inference, call prepare_fast_rcnn_weights once at model-load time and
    use fast_rcnn_predictor_fused directly.
    """
    prepped = prepare_fast_rcnn_weights(w_cls, b_cls, w_bbox, b_bbox)
    return fast_rcnn_predictor_fused(x, *prepped, tile_n=tile_n)


def _init_linear(key, in_features, out_features, dtype=jnp.float32):
    # Deterministic PyTorch-style init: U(-1/sqrt(in), 1/sqrt(in)).
    kw, kb = jax.random.split(key)
    bound = 1.0 / jnp.sqrt(jnp.asarray(in_features, dtype))
    w = jax.random.uniform(kw, (in_features, out_features), dtype,
                           minval=-bound, maxval=bound)
    b = jax.random.uniform(kb, (out_features,), dtype,
                           minval=-bound, maxval=bound)
    return w, b


if __name__ == "__main__":
    key = jax.random.PRNGKey(0)
    k_x, k_x2, k_cls, k_bbox = jax.random.split(key, 4)

    # Small shapes: N=8 ROIs, feature map (8, 4, 4, 2) -> in_channels = 32,
    # num_classes = 8 -> bbox_pred outputs 32.
    N, C, H, W = 8, 4, 4, 2
    in_channels = C * H * W
    num_classes = 8

    x = jax.random.normal(k_x, (N, C, H, W), jnp.float32)   # NCHW, like PyTorch
    w_cls, b_cls = _init_linear(k_cls, in_channels, num_classes)
    w_bbox, b_bbox = _init_linear(k_bbox, in_channels, num_classes * 4)

    # Weight preprocessing happens once (model-load time), not per forward.
    prepped = prepare_fast_rcnn_weights(w_cls, b_cls, w_bbox, b_bbox)

    # Path 1: single ROI tile -> fused-output-column split (2-D parallel grid).
    scores, bbox_deltas = fast_rcnn_predictor_fused(x, *prepped)

    # Path 2: multiple ROI tiles (ragged last tile, no wrapper padding) with a
    # grid-resident, single-buffered weight slab.
    N2 = 40
    x2 = jax.random.normal(k_x2, (N2, in_channels), jnp.float32)
    scores2, bbox2 = fast_rcnn_predictor_fused(x2, *prepped, tile_n=16)

    jax.block_until_ready((scores, bbox_deltas, scores2, bbox2))

    # ---------------- Reference checks ----------------
    def refs(xf):
        xb = xf.astype(jnp.bfloat16)
        s_bf = (jnp.dot(xb, w_cls.astype(jnp.bfloat16),
                        preferred_element_type=jnp.float32) + b_cls)
        b_bf = (jnp.dot(xb, w_bbox.astype(jnp.bfloat16),
                        preferred_element_type=jnp.float32) + b_bbox)
        s_f32 = xf @ w_cls + b_cls
        b_f32 = xf @ w_bbox + b_bbox
        return s_bf, b_bf, s_f32, b_f32

    xflat = x.reshape(N, -1)
    s_bf, bd_bf, s_f32, bd_f32 = refs(xflat)
    assert scores.shape == (N, num_classes)
    assert bbox_deltas.shape == (N, num_classes * 4)
    # (a) bf16 reference (same precision path as the kernel) -- tight.
    assert jnp.allclose(scores, s_bf, atol=1e-3, rtol=1e-3)
    assert jnp.allclose(bbox_deltas, bd_bf, atol=1e-3, rtol=1e-3)
    # (b) full-f32 reference (the PyTorch module's math) -- loose (bf16 MXU).
    assert jnp.allclose(scores, s_f32, atol=5e-2, rtol=5e-2)
    assert jnp.allclose(bbox_deltas, bd_f32, atol=5e-2, rtol=5e-2)

    s2_bf, bd2_bf, s2_f32, bd2_f32 = refs(x2)
    assert scores2.shape == (N2, num_classes)
    assert bbox2.shape == (N2, num_classes * 4)
    assert jnp.allclose(scores2, s2_bf, atol=1e-3, rtol=1e-3)
    assert jnp.allclose(bbox2, bd2_bf, atol=1e-3, rtol=1e-3)
    assert jnp.allclose(scores2, s2_f32, atol=5e-2, rtol=5e-2)
    assert jnp.allclose(bbox2, bd2_f32, atol=5e-2, rtol=5e-2)

    print("KERNEL_OK")
</pallas_src>

<mosaic_0001>
module attributes {stable_mosaic.version = 11 : i64} {
  func.func @_predictor_kernel(%arg0: i32, %arg1: i32, %arg2: memref<8x32xf32, #tpu.memory_space<vmem>>, %arg3: memref<32x128xbf16, #tpu.memory_space<vmem>>, %arg4: memref<1x128xf32, #tpu.memory_space<vmem>>, %arg5: memref<8x128xf32, #tpu.memory_space<vmem>>) attributes {dimension_semantics = [#tpu.dimension_semantics<parallel>, #tpu.dimension_semantics<parallel>], iteration_bounds = array<i64: 1, 2>, scalar_prefetch = 0 : i64, scratch_operands = 0 : i64, tpu.core_type = #tpu.core_type<tc>, window_params = [{transform_indices = @transform_0, window_bounds = array<i64: 8, 32>}, {transform_indices = @transform_1, window_bounds = array<i64: 32, 128>}, {transform_indices = @transform_2, window_bounds = array<i64: 1, 128>}, {transform_indices = @transform_3, window_bounds = array<i64: 8, 128>}]} {
    %c0 = arith.constant 0 : index
    %c0_0 = arith.constant 0 : index
    %0 = vector.load %arg2[%c0, %c0_0] : memref<8x32xf32, #tpu.memory_space<vmem>>, vector<8x32xf32>
    %1 = arith.truncf %0 : vector<8x32xf32> to vector<8x32xbf16>
    %c0_1 = arith.constant 0 : index
    %c0_2 = arith.constant 0 : index
    %2 = vector.load %arg3[%c0_1, %c0_2] : memref<32x128xbf16, #tpu.memory_space<vmem>>, vector<32x128xbf16>
    %cst = arith.constant dense<0.000000e+00> : vector<8x128xf32>
    %3 = tpu.matmul %1, %2, %cst {dimension_numbers = #tpu.dot_dimension_numbers<[1], [0], [0], [1], [0, 0, 1, 1], [], []>} : vector<8x32xbf16>, vector<32x128xbf16>, vector<8x128xf32> -> vector<8x128xf32>
    %c0_3 = arith.constant 0 : index
    %c0_4 = arith.constant 0 : index
    %4 = vector.load %arg4[%c0_3, %c0_4] : memref<1x128xf32, #tpu.memory_space<vmem>>, vector<1x128xf32>
    %5 = vector.broadcast %4 : vector<1x128xf32> to vector<8x128xf32>
    %6 = arith.addf %3, %5 : vector<8x128xf32>
    %c0_5 = arith.constant 0 : index
    %c0_6 = arith.constant 0 : index
    %7 = vector.load %arg5[%c0_5, %c0_6] : memref<8x128xf32, #tpu.memory_space<vmem>>, vector<8x128xf32>
    tpu.vector_store %arg5[%c0_5, %c0_6], %6 {strides = array<i32>} : memref<8x128xf32, #tpu.memory_space<vmem>>, vector<8x128xf32>,
    return
  }
  func.func @transform_0(%arg0: i32, %arg1: i32) -> (i32, i32) {
    %c0_i32 = arith.constant 0 : i32
    %c0_i32_0 = arith.constant 0 : i32
    return %arg0, %c0_i32 : i32, i32
  }
  func.func @transform_1(%arg0: i32, %arg1: i32) -> (i32, i32) {
    %c0_i32 = arith.constant 0 : i32
    %c0_i32_0 = arith.constant 0 : i32
    return %c0_i32, %arg1 : i32, i32
  }
  func.func @transform_2(%arg0: i32, %arg1: i32) -> (i32, i32) {
    %c0_i32 = arith.constant 0 : i32
    %c0_i32_0 = arith.constant 0 : i32
    return %c0_i32, %arg1 : i32, i32
  }
  func.func @transform_3(%arg0: i32, %arg1: i32) -> (i32, i32) {
    %c0_i32 = arith.constant 0 : i32
    return %arg0, %arg1 : i32, i32
  }
}

</mosaic_0001>

<llo_original>
// kernel: tpu_custom_call.1
$region0: #{tpu_custom_call.1}
  #allocation0 [shape = 'u32[]', space=smem, size = 0x4, offset = 0x4, fixed_abs, tag = 'smem constant byte address 0x4 - core index']
  #allocation1 [shape = 'u32[72,128]{1,0:T(1,128)}', space=vmem, size = 0x9000, scoped, tag = 'internal scratch']
  %s0 = inlined_call_operand.hbm [shape: f32[8,32], index: 0, kind: input, shape index: {}]
  %s1 = inlined_call_operand.hbm [shape: bf16[32,256], index: 1, kind: input, shape index: {}]
  %s2 = inlined_call_operand.hbm [shape: f32[1,256], index: 2, kind: input, shape index: {}]
  %s3 = inlined_call_operand.hbm [shape: f32[8,256], index: 3, kind: output, shape index: {}]
  %s4 = sld [smem:[#allocation0]]
  $region57: #{tpu_custom_call.1} parent=0
    _
  %s6 = ssub.s32 1, %s4
  %s7 = scalar_select 0, %s6, %s4
  $region1: #{tpu_custom_call.1} parent=0
    #allocation2 [shape = 'u8[4096]{0}', space=vmem, size = 0x1000, scoped, tag = 'input window, operand 0, single buffered']
    #allocation3 [shape = 's32[2]{0}', space=sflag, size = 0x8, scoped, tag = 'scoped memory for tpu_custom_call.1']
    #allocation4 [shape = 's32[2]{0}', space=sflag, size = 0x8, scoped, tag = 'scoped memory for tpu_custom_call.1']
    #allocation5 [shape = 'u8[16384]{0}', space=vmem, size = 0x4000, scoped, tag = 'input window, operand 1']
    #allocation6 [shape = 's32[2]{0}', space=sflag, size = 0x8, scoped, tag = 'scoped memory for tpu_custom_call.1']
    #allocation7 [shape = 'u8[1024]{0}', space=vmem, size = 0x400, scoped, tag = 'input window, operand 2']
    #allocation8 [shape = 'u8[8192]{0}', space=vmem, size = 0x2000, scoped, tag = 'output window, operand 0']
    %8 = vsyncpa [#allocation3], 0
    %9 = vsyncpa [#allocation6], 0
    %s10 = scalar_lea.sflag [#allocation6], 1
    %11 = vsyncpa %s10, 0
    %12 = vsyncpa [#allocation4], 0
    %s13 = scalar_lea.sflag [#allocation4], 1
    %14 = vsyncpa %s13, 0
    loop: start=0, step=1, limit=4
    $region2: #{tpu_custom_call.1} parent=1 // loop_pre_header
      _
    $region3: #{tpu_custom_call.1} parent=1 // loop_header
      %s16 = sphi 0, %s20
      %p17 = scmp.ge.s32.totalorder %s16, 4
      %s23 = sphi 0, %s35
      %s24 = sphi 0, %s31
      %s25 = sphi 0, %s23
      %s26 = sphi 0, %s24
      %s27 = sphi 0, %s25
      %s28 = sphi 0, %s26
      %s38 = sphi 0, %s40
      %s41 = sphi 0, %s38
      %s42 = sphi 0, %s41
      %s58 = sphi 0, %s42
      %s64 = sphi 0, %s66
      %s67 = sphi 0, %s64
      %s68 = sphi 0, %s67
      %s84 = sphi 0, %s68
      %s90 = sphi 0, %s92
      %s93 = sphi 0, %s90
      %s94 = sphi 0, %s93
      %s110 = sphi 0, %s94
      %s118 = sphi 0, %s120
      %s121 = sphi 0, %s118
      %s122 = sphi 0, %s121
      %s138 = sphi 0, %s122
    $region4: #{tpu_custom_call.1} parent=1 // loop_header_branch
      %19 = sbr.rel (%p17) target = $region8
    $region5: #{tpu_custom_call.1} parent=1 // loop_body
      %s21 = ssub.s32 %s16, 1
      %s22 = ssub.s32 %s16, 2
      %s29 = sadd.s32 1, %s24
      %p30 = scmp.ge.s32.totalorder %s29, 2
      %s31 = scalar_select %p30, 0, %s29
      %s32 = sadd.s32 1, %s23
      %s33 = scalar_select %p30, %s32, %s23
      %p34 = scmp.ge.s32.totalorder %s33, 1
      %s35 = scalar_select %p34, 0, %s33
      %s36 = ssub.s32 %s23, %s35
      %p37 = scmp.eq.s32.totalorder %s36, 0
      %s39 = sadd.s32 %s38, 1
      %s40 = scalar_select %p37, %s38, %s39
      %p43 = pneg %p37
      %p44 = scmp.eq.s32.totalorder %s16, 1
      %p45 = por %p43, %p44
      %p46 = scmp.ne.s32.totalorder %s38, %s41
      %p47 = scmp.eq.s32.totalorder %s16, 0
      %p48 = por %p46, %p47
      %p49 = scmp.ne.s32.totalorder %s38, %s41
      %p50 = scmp.eq.s32.totalorder %s21, 1
      %p51 = por %p49, %p50
      %p52 = scmp.ne.s32.totalorder %s41, %s42
      %p53 = scmp.eq.s32.totalorder %s21, 0
      %p54 = por %p52, %p53
      %p55 = scmp.ne.s32.totalorder %s41, %s42
      %p56 = scmp.eq.s32.totalorder %s22, 1
      %p57 = por %p55, %p56
      %p59 = scmp.ne.s32.totalorder %s42, %s58
      %p60 = scmp.eq.s32.totalorder %s22, 0
      %p61 = por %p59, %p60
      %s62 = ssub.s32 %s24, %s31
      %p63 = scmp.eq.s32.totalorder %s62, 0
      %s65 = sadd.s32 %s64, 1
      %s66 = scalar_select %p63, %s64, %s65
      %p69 = pneg %p63
      %p70 = scmp.eq.s32.totalorder %s16, 1
      %p71 = por %p69, %p70
      %p72 = scmp.ne.s32.totalorder %s64, %s67
      %p73 = scmp.eq.s32.totalorder %s16, 0
      %p74 = por %p72, %p73
      %p75 = scmp.ne.s32.totalorder %s64, %s67
      %p76 = scmp.eq.s32.totalorder %s21, 1
      %p77 = por %p75, %p76
      %p78 = scmp.ne.s32.totalorder %s67, %s68
      %p79 = scmp.eq.s32.totalorder %s21, 0
      %p80 = por %p78, %p79
      %p81 = scmp.ne.s32.totalorder %s67, %s68
      %p82 = scmp.eq.s32.totalorder %s22, 1
      %p83 = por %p81, %p82
      %p85 = scmp.ne.s32.totalorder %s68, %s84
      %p86 = scmp.eq.s32.totalorder %s22, 0
      %p87 = por %p85, %p86
      %s88 = ssub.s32 %s24, %s31
      %p89 = scmp.eq.s32.totalorder %s88, 0
      %s91 = sadd.s32 %s90, 1
      %s92 = scalar_select %p89, %s90, %s91
      %p95 = pneg %p89
      %p96 = scmp.eq.s32.totalorder %s16, 1
      %p97 = por %p95, %p96
      %p98 = scmp.ne.s32.totalorder %s90, %s93
      %p99 = scmp.eq.s32.totalorder %s16, 0
      %p100 = por %p98, %p99
      %p101 = scmp.ne.s32.totalorder %s90, %s93
      %p102 = scmp.eq.s32.totalorder %s21, 1
      %p103 = por %p101, %p102
      %p104 = scmp.ne.s32.totalorder %s93, %s94
      %p105 = scmp.eq.s32.totalorder %s21, 0
      %p106 = por %p104, %p105
      %p107 = scmp.ne.s32.totalorder %s93, %s94
      %p108 = scmp.eq.s32.totalorder %s22, 1
      %p109 = por %p107, %p108
      %p111 = scmp.ne.s32.totalorder %s94, %s110
      %p112 = scmp.eq.s32.totalorder %s22, 0
      %p113 = por %p111, %p112
      %s114 = ssub.s32 %s23, %s35
      %s115 = ssub.s32 %s24, %s31
      %s116 = sor.u32 %s114, %s115
      %p117 = scmp.eq.s32.totalorder %s116, 0
      %s119 = sadd.s32 %s118, 1
      %s120 = scalar_select %p117, %s118, %s119
      %p123 = pneg %p117
      %p124 = scmp.eq.s32.totalorder %s16, 1
      %p125 = por %p123, %p124
      %p126 = scmp.ne.s32.totalorder %s118, %s121
      %p127 = scmp.eq.s32.totalorder %s16, 0
      %p128 = por %p126, %p127
      %p129 = scmp.ne.s32.totalorder %s118, %s121
      %p130 = scmp.eq.s32.totalorder %s21, 1
      %p131 = por %p129, %p130
      %p132 = scmp.ne.s32.totalorder %s121, %s122
      %p133 = scmp.eq.s32.totalorder %s21, 0
      %p134 = por %p132, %p133
      %p135 = scmp.ne.s32.totalorder %s121, %s122
      %p136 = scmp.eq.s32.totalorder %s22, 1
      %p137 = por %p135, %p136
      %p139 = scmp.ne.s32.totalorder %s122, %s138
      %p140 = scmp.eq.s32.totalorder %s22, 0
      %p141 = por %p139, %p140
      %p142 = scmp.le.s32.totalorder 1, %s16
      %p143 = scmp.lt.s32.totalorder %s16, 3
      %p144 = pnand %p142, %p143
      %p145 = pneg %p144
      // Predicated region
      $region9: #{tpu_custom_call.1} parent=5 // pred_check
        _
      $region10: #{tpu_custom_call.1} parent=5 // pred_check_branch
        %147 = sbr.rel (%p144) target = $region12
      $region11: #{tpu_custom_call.1} parent=5 // pred_region
        %s148 = ssub.s32 %s16, 1
        // Predicated region
        $region13: #{tpu_custom_call.1} parent=11 // pred_check
          %p149 = pneg %p54
        $region14: #{tpu_custom_call.1} parent=11 // pred_check_branch
          %151 = sbr.rel (%p149) target = $region16
        $region15: #{tpu_custom_call.1} parent=11 // pred_region
          %153 = vsyncadd [#allocation3], 0
          %s154 = smul.addr %s25, 8
          %s155 = scalar_lea.hbm %s0, %s154
          %s157 = sshll.u32 %s155, 4
          %s158 = int_to_ptr.hbm [resolvable:$true] %s157
          %s159 = sshll.u32 [#allocation2], 4
          %s160 = int_to_ptr.vmem [resolvable:$true] %s159
          %162 = dma.hbm_to_vmem [thread:$0]  %s158, 128, %s160, [#allocation3]
        $region16: #{tpu_custom_call.1} parent=11 // pred_fallthru
          _
      $region12: #{tpu_custom_call.1} parent=5 // pred_fallthru
        _
      %p163 = scmp.lt.s32.totalorder %s16, 2
      // Predicated region
      $region17: #{tpu_custom_call.1} parent=5 // pred_check
        %p164 = pneg %p163
      $region18: #{tpu_custom_call.1} parent=5 // pred_check_branch
        %166 = sbr.rel (%p164) target = $region20
      $region19: #{tpu_custom_call.1} parent=5 // pred_region
        // Predicated region
        $region21: #{tpu_custom_call.1} parent=19 // pred_check
          %p167 = pneg %p74
        $region22: #{tpu_custom_call.1} parent=19 // pred_check_branch
          %169 = sbr.rel (%p167) target = $region24
        $region23: #{tpu_custom_call.1} parent=19 // pred_region
          %s170 = sand.u32 %s16, 1
          %s171 = scalar_lea.sflag [#allocation6], %s170
          %s172 = sand.u32 %s64, 1
          %s173 = smul.addr %s172, 16
          %s174 = scalar_lea.vmem [#allocation5], %s173
          %176 = vsyncadd %s171, 0
          %s177 = smul.addr %s24, 4
          %s178 = scalar_lea.hbm %s1, %s177
          %s179 = sshll.u32 %s178, 4
          %s180 = int_to_ptr.hbm [resolvable:$true] %s179
          %s181 = sshll.u32 %s174, 4
          %s182 = int_to_ptr.vmem [resolvable:$true] %s181
          %187 = dma.hbm_to_vmem [thread:$0]  %s180, 256, %s182, %s171, 128, 64, 4
        $region24: #{tpu_custom_call.1} parent=19 // pred_fallthru
          _
        // Predicated region
        $region25: #{tpu_custom_call.1} parent=19 // pred_check
          %p188 = pneg %p100
        $region26: #{tpu_custom_call.1} parent=19 // pred_check_branch
          %190 = sbr.rel (%p188) target = $region28
        $region27: #{tpu_custom_call.1} parent=19 // pred_region
          %s191 = sand.u32 %s16, 1
          %s192 = scalar_lea.sflag [#allocation6], %s191
          %s193 = sand.u32 %s90, 1
          %s194 = scalar_lea.vmem [#allocation7], %s193
          %196 = vsyncadd %s192, 0
          %s197 = scalar_lea.hbm %s2, %s24
          %s199 = sshll.u32 %s197, 4
          %s200 = int_to_ptr.hbm [resolvable:$true] %s199
          %s201 = sshll.u32 %s194, 4
          %s202 = int_to_ptr.vmem [resolvable:$true] %s201
          %204 = dma.hbm_to_vmem [thread:$0]  %s200, 16, %s202, %s192
        $region28: #{tpu_custom_call.1} parent=19 // pred_fallthru
          _
      $region20: #{tpu_custom_call.1} parent=5 // pred_fallthru
        _
      %p205 = scmp.le.s32.totalorder 1, %s16
      %p206 = scmp.lt.s32.totalorder %s16, 3
      %p207 = pnand %p205, %p206
      %p208 = pneg %p207
      // Predicated region
      $region29: #{tpu_custom_call.1} parent=5 // pred_check
        _
      $region30: #{tpu_custom_call.1} parent=5 // pred_check_branch
        %210 = sbr.rel (%p207) target = $region32
      $region31: #{tpu_custom_call.1} parent=5 // pred_region
        %s211 = ssub.s32 %s16, 1
        // Predicated region
        $region33: #{tpu_custom_call.1} parent=31 // pred_check
          %p212 = pneg %p54
        $region34: #{tpu_custom_call.1} parent=31 // pred_check_branch
          %214 = sbr.rel (%p212) target = $region36
        $region35: #{tpu_custom_call.1} parent=31 // pred_region
          %216 = dma.done [#allocation3], 128
        $region36: #{tpu_custom_call.1} parent=31 // pred_fallthru
          _
        %s217 = sand.u32 %s21, 1
        %s218 = scalar_lea.sflag [#allocation6], %s217
        %s219 = sand.u32 %s67, 1
        %s220 = smul.addr %s219, 16
        %s221 = scalar_lea.vmem [#allocation5], %s220
        // Predicated region
        $region37: #{tpu_custom_call.1} parent=31 // pred_check
          %p222 = pneg %p80
        $region38: #{tpu_custom_call.1} parent=31 // pred_check_branch
          %224 = sbr.rel (%p222) target = $region40
        $region39: #{tpu_custom_call.1} parent=31 // pred_region
          %226 = dma.done %s218, 256
        $region40: #{tpu_custom_call.1} parent=31 // pred_fallthru
          _
        %s227 = sand.u32 %s21, 1
        %s228 = scalar_lea.sflag [#allocation6], %s227
        %s229 = sand.u32 %s93, 1
        %s230 = scalar_lea.vmem [#allocation7], %s229
        // Predicated region
        $region41: #{tpu_custom_call.1} parent=31 // pred_check
          %p231 = pneg %p106
        $region42: #{tpu_custom_call.1} parent=31 // pred_check_branch
          %233 = sbr.rel (%p231) target = $region44
        $region43: #{tpu_custom_call.1} parent=31 // pred_region
          %235 = dma.done %s228, 16
        $region44: #{tpu_custom_call.1} parent=31 // pred_fallthru
          _
        %p236 = pneg %p54
        %p237 = pneg %p51
        %s238 = sand.u32 %s21, 1
        %s239 = scalar_lea.sflag [#allocation6], %s238
        %s240 = sand.u32 %s67, 1
        %s241 = smul.addr %s240, 16
        %s242 = scalar_lea.vmem [#allocation5], %s241
        %p243 = pneg %p80
        %p244 = pneg %p77
        %s245 = sand.u32 %s21, 1
        %s246 = scalar_lea.sflag [#allocation6], %s245
        %s247 = sand.u32 %s93, 1
        %s248 = scalar_lea.vmem [#allocation7], %s247
        %p249 = pneg %p106
        %p250 = pneg %p103
        %p251 = pneg %p134
        %p252 = pneg %p131
        %s253 = sand.u32 %s121, 1
        %s254 = scalar_lea.sflag [#allocation4], %s253
        %s255 = sand.u32 %s121, 1
        %s256 = smul.addr %s255, 8
        %s257 = scalar_lea.vmem [#allocation8], %s256
        %v259 = vld [vmem:[#allocation2] sm:$0xff]
        %v260 = vpack.c.bf16 %v259, %v259
        %v261 = vld [vmem:[%s221] sm:$0xf]
        %v262 = vld [vmem:[%s221 + $0x4] sm:$0xf]
        %v263 = vld [vmem:[%s221 + $0x8] sm:$0xf]
        %v264 = vld [vmem:[%s221 + $0xc] sm:$0xf]
        %v265 = vld [vmem:[%s230] sm:$0x1]
        %v267 = vperm.slane %v265, 0
        %v273 = vunpack.c.l.b16 %v261
        %v274 = vunpack.c.l.b16 %v262
        %v275 = vunpack.c.l.b16 %v263
        %v276 = vunpack.c.l.b16 %v264
        %v277 = vpack.c.b16 %v274, %v273
        %v278 = vpack.c.b16 %v276, %v275
        %vm281 = vcmask 261120
        %v283 = vsel %vm281, %v260, 0
        %285 = vmatpush.bf16.msra.mxu0 0
        %286 = vmatpush.bf16.msra.mxu0 0
        %287 = vmatpush.bf16.msra.mxu0 0
        %288 = vmatpush.bf16.msra.mxu0 0
        %289 = vmatpush.bf16.msra.mxu0 0
        %290 = vmatpush.bf16.msra.mxu0 0
        %291 = vmatpush.bf16.msra.mxu0 %v278
        %292 = vmatpush.bf16.msra.mxu0 %v277
        %293 = vmatmul.bf16.gmra.mxu0 %v283
        %v294 = vpop.f32.mrf.mxu0
        %v295 = vadd.f32 %v267, %v294
        %v296 = vpop.f32.mrf.mxu0
        %297 = vdwg.mxu0
        %298 = vst [vmem:[%s257] sm:$0xff] %v295
        %s299 = sand.u32 %s121, 1
        %s300 = scalar_lea.sflag [#allocation4], %s299
        %s301 = sand.u32 %s121, 1
        %s302 = smul.addr %s301, 8
        %s303 = scalar_lea.vmem [#allocation8], %s302
        // Predicated region
        $region45: #{tpu_custom_call.1} parent=31 // pred_check
          %p304 = pneg %p131
        $region46: #{tpu_custom_call.1} parent=31 // pred_check_branch
          %306 = sbr.rel (%p304) target = $region48
        $region47: #{tpu_custom_call.1} parent=31 // pred_region
          %308 = vsyncadd %s300, 0
          %s309 = smul.addr %s25, 2
          %s310 = sadd.s32 %s26, %s309
          %s311 = smul.addr %s310, 8
          %s312 = scalar_lea.hbm %s3, %s311
          %s314 = sshll.u32 %s303, 4
          %s315 = int_to_ptr.vmem [resolvable:$true] %s314
          %s316 = sshll.u32 %s312, 4
          %s317 = int_to_ptr.hbm [resolvable:$true] %s316
          %319 = dma.vmem_to_hbm [thread:$0]  %s315, 128, %s317, %s300
        $region48: #{tpu_custom_call.1} parent=31 // pred_fallthru
          _
      $region32: #{tpu_custom_call.1} parent=5 // pred_fallthru
        _
      %p320 = scmp.le.s32.totalorder 2, %s16
      // Predicated region
      $region49: #{tpu_custom_call.1} parent=5 // pred_check
        %p321 = pneg %p320
      $region50: #{tpu_custom_call.1} parent=5 // pred_check_branch
        %323 = sbr.rel (%p321) target = $region52
      $region51: #{tpu_custom_call.1} parent=5 // pred_region
        %s324 = ssub.s32 %s16, 2
        // Predicated region
        $region53: #{tpu_custom_call.1} parent=51 // pred_check
          %p325 = pneg %p137
        $region54: #{tpu_custom_call.1} parent=51 // pred_check_branch
          %327 = sbr.rel (%p325) target = $region56
        $region55: #{tpu_custom_call.1} parent=51 // pred_region
          %s328 = sand.u32 %s122, 1
          %s329 = scalar_lea.sflag [#allocation4], %s328
          %s330 = sand.u32 %s122, 1
          %s331 = smul.addr %s330, 8
          %s332 = scalar_lea.vmem [#allocation8], %s331
          %334 = dma.done %s329, 128
        $region56: #{tpu_custom_call.1} parent=51 // pred_fallthru
          _
      $region52: #{tpu_custom_call.1} parent=5 // pred_fallthru
        _
    $region6: #{tpu_custom_call.1} parent=1 // loop_footer
      %s20 = sadd.s32 1, %s16
    $region7: #{tpu_custom_call.1} parent=1 // loop_footer_branch
      %15 = sbr.rel target = $region3
    $region8: #{tpu_custom_call.1} parent=1 // loop_exit
      _
    %335 = vsyncpa [#allocation3], 1
    %s336 = scalar_lea.sflag [#allocation3], 1
    %337 = vsyncpa %s336, 1
    %338 = vsyncpa [#allocation6], 1
    %s339 = scalar_lea.sflag [#allocation6], 1
    %340 = vsyncpa %s339, 1
    %341 = vsyncpa [#allocation4], 1
    %s342 = scalar_lea.sflag [#allocation4], 1
    %343 = vsyncpa %s342, 1

</llo_original>
